<compile_context>
chip_gen: v7x
topology: tpu7x:2x2x1
jax: 0.10.0
libtpu: 0.0.40
codegen_flags: <defaults>
</compile_context>

<pallas_src>
import functools

import jax
import jax.numpy as jnp
import numpy as np
from jax.experimental import pallas as pl
from jax.experimental.pallas import tpu as pltpu


def self_output_kernel(x_ref, res_ref, w_ref, p_ref, out_ref, *, eps):
    # Dense: y = x @ W.T with W in PyTorch (out_features, in_features) layout.
    # Contract x's dim 1 with W's dim 1 directly (no transposed copy of W anywhere).
    h = jax.lax.dot_general(
        x_ref[...], w_ref[...],
        dimension_numbers=(((1,), (1,)), ((), ())),
        preferred_element_type=jnp.float32,
    )
    bias = p_ref[0:1, :]
    gamma = p_ref[1:2, :]
    beta = p_ref[2:3, :]
    # Residual added in f32 regardless of its storage dtype.
    h = h + bias + res_ref[...].astype(jnp.float32)
    # TODO(synk): StableDropout/XDropout is identity in eval mode (drop_prob ignored); training-mode dropout not implemented.

    # LayerNorm over hidden dim in f32; two-pass variance (numerically safer than E[x^2]-mean^2).
    mean = jnp.mean(h, axis=-1, keepdims=True)
    centered = h - mean
    var = jnp.mean(centered * centered, axis=-1, keepdims=True)
    inv = jax.lax.rsqrt(var + eps)                       # EUP slot, effectively free
    # Folded affine: single broadcast scale then one mul-add per element.
    out_ref[...] = (centered * (gamma * inv) + beta).astype(out_ref.dtype)


def _round_up(x, m):
    return ((x + m - 1) // m) * m


def _default_vmem_limit_bytes():
    """Per-generation scoped VMEM limit. None -> leave compiler default."""
    try:
        kind = jax.devices()[0].device_kind.lower()
    except Exception:
        return None
    if any(t in kind for t in ("v2", "v3")):
        return None                      # small-VMEM chips: keep compiler default
    if any(t in kind for t in ("v4", "v5", "v6")):
        return 100 * 1024 * 1024         # 128 MiB physical VMEM -> generous scoped limit
    return 48 * 1024 * 1024              # v7x-class: 64 MiB physical, leave headroom


def _pick_row_tile(row_tile, n_rows, hidden, budget_bytes, w_bufs,
                   x_elt, res_elt, out_elt, w_elt):
    """Largest row tile (multiple of 8 sublanes) whose VMEM footprint fits the budget."""
    tn = max(8, min(_round_up(row_tile, 8), _round_up(n_rows, 8)))

    def est(t):
        rows = 2 * t * hidden * (x_elt + res_elt + out_elt)   # double-buffered activation blocks
        wgt = w_bufs * hidden * hidden * w_elt                 # resident weight buffer(s)
        tmp = 3 * t * hidden * 4                               # f32 intermediates (h, centered, out)
        par = 2 * 3 * hidden * 4                               # packed bias/gamma/beta
        return rows + wgt + tmp + par

    while tn > 8 and est(tn) > budget_bytes:
        tn = max(8, ((tn // 2) // 8) * 8)
    return tn


def _resident_spec(shape, single_buffer):
    """Constant-index (VMEM-resident) block; single-buffered when supported."""
    if single_buffer and hasattr(pl, "Buffered"):
        return pl.BlockSpec(shape, lambda i: (0, 0), pipeline_mode=pl.Buffered(1))
    return pl.BlockSpec(shape, lambda i: (0, 0))


def deberta_v2_self_output(hidden_states, input_tensor, weight, bias, gamma, beta,
                           *, eps, row_tile=512, matmul_dtype=None, vmem_limit_bytes=None):
    """DebertaV2SelfOutput forward.

    weight is the PyTorch nn.Linear weight, shape (H, H): y = x @ weight.T + bias.
    matmul_dtype=jnp.bfloat16 halves HBM traffic for x/W on the MXU path (f32 accumulation
    and f32 LayerNorm are kept); default None keeps the input dtypes.
    """
    B, S, H = hidden_states.shape
    N = B * S
    out_dtype = hidden_states.dtype

    x = hidden_states.reshape(N, H)
    res = input_tensor.reshape(N, H)             # keep original dtype; cast to f32 in-kernel
    w = weight
    if matmul_dtype is not None:
        x = x.astype(matmul_dtype)
        w = w.astype(matmul_dtype)

    params = jnp.stack([bias.astype(jnp.float32),
                        gamma.astype(jnp.float32),
                        beta.astype(jnp.float32)], axis=0)     # (3, H) resident

    vmem_limit = vmem_limit_bytes if vmem_limit_bytes is not None else _default_vmem_limit_bytes()
    budget = int(0.9 * vmem_limit) if vmem_limit is not None else 16 * 1024 * 1024

    x_elt = jnp.dtype(x.dtype).itemsize
    res_elt = jnp.dtype(res.dtype).itemsize
    out_elt = jnp.dtype(out_dtype).itemsize
    w_elt = jnp.dtype(w.dtype).itemsize

    def _run(single_buffer_resident):
        w_bufs = 1 if (single_buffer_resident and hasattr(pl, "Buffered")) else 2
        TN = _pick_row_tile(row_tile, N, H, budget, w_bufs, x_elt, res_elt, out_elt, w_elt)
        grid = (pl.cdiv(N, TN),)                 # partial tail block is masked by Pallas
        row_spec = pl.BlockSpec((TN, H), lambda i: (i, 0))
        w_spec = _resident_spec((H, H), single_buffer_resident)
        p_spec = _resident_spec((3, H), single_buffer_resident)
        return pl.pallas_call(
            functools.partial(self_output_kernel, eps=eps),
            out_shape=jax.ShapeDtypeStruct((N, H), out_dtype),
            grid=grid,
            in_specs=[row_spec, row_spec, w_spec, p_spec],
            out_specs=row_spec,
            compiler_params=pltpu.CompilerParams(
                dimension_semantics=("parallel",),
                vmem_limit_bytes=vmem_limit),
        )(x, res, w, params)

    try:
        out = _run(True)
    except Exception:
        # Fallback without single-buffered resident blocks (pipeline_mode unsupported, etc.).
        out = _run(False)

    return out.reshape(B, S, H)


def reference(hidden_states, input_tensor, weight, bias, gamma, beta, *, eps):
    # Gold reference in float64 numpy.
    x = np.asarray(hidden_states, dtype=np.float64)
    r = np.asarray(input_tensor, dtype=np.float64)
    w = np.asarray(weight, dtype=np.float64)
    b = np.asarray(bias, dtype=np.float64)
    g = np.asarray(gamma, dtype=np.float64)
    bt = np.asarray(beta, dtype=np.float64)
    h = x @ w.T + b + r
    mean = h.mean(-1, keepdims=True)
    var = ((h - mean) ** 2).mean(-1, keepdims=True)
    return (h - mean) / np.sqrt(var + eps) * g + bt


if __name__ == "__main__":
    # Small DebertaV2-like config: hidden_size=128 (lane-dense stores), layer_norm_eps=1e-7.
    # S=7 makes N=14 not tile-aligned, exercising the masked partial tail block (no padding copies).
    B, S, H = 2, 7, 128
    eps = 1e-7

    key = jax.random.PRNGKey(0)
    k1, k2, k3, k4, k5, k6 = jax.random.split(key, 6)

    hidden_states = jax.random.normal(k1, (B, S, H), dtype=jnp.float32)
    input_tensor = jax.random.normal(k2, (B, S, H), dtype=jnp.float32)
    weight = jax.random.normal(k3, (H, H), dtype=jnp.float32) / np.sqrt(H)  # nn.Linear weight (H, H)
    bias = 0.02 * jax.random.normal(k4, (H,), dtype=jnp.float32)
    gamma = 1.0 + 0.01 * jax.random.normal(k5, (H,), dtype=jnp.float32)
    beta = 0.01 * jax.random.normal(k6, (H,), dtype=jnp.float32)

    # row_tile=8 so the tiny test exercises a multi-step grid (2 steps) + masked tail.
    out = deberta_v2_self_output(hidden_states, input_tensor, weight, bias, gamma, beta,
                                 eps=eps, row_tile=8)
    out = jax.block_until_ready(out)

    ref = reference(hidden_states, input_tensor, weight, bias, gamma, beta, eps=eps)
    np.testing.assert_allclose(np.asarray(out, dtype=np.float64), ref, atol=2e-4, rtol=2e-4)
    print("KERNEL_OK")
</pallas_src>

<mosaic_0001>
module attributes {stable_mosaic.version = 11 : i64} {
  func.func @self_output_kernel(%arg0: i32, %arg1: memref<8x128xf32, #tpu.memory_space<vmem>>, %arg2: memref<8x128xf32, #tpu.memory_space<vmem>>, %arg3: memref<128x128xf32, #tpu.memory_space<vmem>>, %arg4: memref<3x128xf32, #tpu.memory_space<vmem>>, %arg5: memref<8x128xf32, #tpu.memory_space<vmem>>) attributes {dimension_semantics = [#tpu.dimension_semantics<parallel>], iteration_bounds = array<i64: 2>, scalar_prefetch = 0 : i64, scratch_operands = 0 : i64, tpu.core_type = #tpu.core_type<tc>, window_params = [{transform_indices = @transform_0, window_bounds = array<i64: 8, 128>}, {transform_indices = @transform_1, window_bounds = array<i64: 8, 128>}, {pipeline_mode = #tpu.pipeline_mode<synchronous>, transform_indices = @transform_2, window_bounds = array<i64: 128, 128>}, {pipeline_mode = #tpu.pipeline_mode<synchronous>, transform_indices = @transform_3, window_bounds = array<i64: 3, 128>}, {transform_indices = @transform_4, window_bounds = array<i64: 8, 128>}]} {
    %c0 = arith.constant 0 : index
    %c0_0 = arith.constant 0 : index
    %0 = vector.load %arg1[%c0, %c0_0] : memref<8x128xf32, #tpu.memory_space<vmem>>, vector<8x128xf32>
    %c0_1 = arith.constant 0 : index
    %c0_2 = arith.constant 0 : index
    %1 = vector.load %arg3[%c0_1, %c0_2] : memref<128x128xf32, #tpu.memory_space<vmem>>, vector<128x128xf32>
    %cst = arith.constant dense<0.000000e+00> : vector<8x128xf32>
    %2 = tpu.matmul %0, %1, %cst {dimension_numbers = #tpu.dot_dimension_numbers<[1], [1], [0], [0], [0, 0, 1, 0], [], []>} : vector<8x128xf32>, vector<128x128xf32>, vector<8x128xf32> -> vector<8x128xf32>
    %c0_3 = arith.constant 0 : index
    %c0_4 = arith.constant 0 : index
    %3 = vector.load %arg4[%c0_3, %c0_4] : memref<3x128xf32, #tpu.memory_space<vmem>>, vector<1x128xf32>
    %c1 = arith.constant 1 : index
    %c0_5 = arith.constant 0 : index
    %4 = vector.load %arg4[%c1, %c0_5] : memref<3x128xf32, #tpu.memory_space<vmem>>, vector<1x128xf32>
    %c2 = arith.constant 2 : index
    %c0_6 = arith.constant 0 : index
    %5 = vector.load %arg4[%c2, %c0_6] : memref<3x128xf32, #tpu.memory_space<vmem>>, vector<1x128xf32>
    %6 = vector.broadcast %3 : vector<1x128xf32> to vector<8x128xf32>
    %7 = arith.addf %2, %6 : vector<8x128xf32>
    %c0_7 = arith.constant 0 : index
    %c0_8 = arith.constant 0 : index
    %8 = vector.load %arg2[%c0_7, %c0_8] : memref<8x128xf32, #tpu.memory_space<vmem>>, vector<8x128xf32>
    %9 = arith.addf %7, %8 : vector<8x128xf32>
    %cst_9 = arith.constant dense<0.000000e+00> : vector<8xf32>
    %10 = vector.multi_reduction <add>, %9, %cst_9 [1] : vector<8x128xf32> to vector<8xf32>
    %11 = vector.shape_cast %10 : vector<8xf32> to vector<8x1xf32>
    %cst_10 = arith.constant 1.280000e+02 : f32
    %12 = vector.broadcast %cst_10 : f32 to vector<8x1xf32>
    %13 = arith.divf %11, %12 : vector<8x1xf32>
    %14 = vector.broadcast %13 : vector<8x1xf32> to vector<8x128xf32>
    %15 = arith.subf %9, %14 : vector<8x128xf32>
    %16 = arith.mulf %15, %15 : vector<8x128xf32>
    %cst_11 = arith.constant dense<0.000000e+00> : vector<8xf32>
    %17 = vector.multi_reduction <add>, %16, %cst_11 [1] : vector<8x128xf32> to vector<8xf32>
    %18 = vector.shape_cast %17 : vector<8xf32> to vector<8x1xf32>
    %cst_12 = arith.constant 1.280000e+02 : f32
    %19 = vector.broadcast %cst_12 : f32 to vector<8x1xf32>
    %20 = arith.divf %18, %19 : vector<8x1xf32>
    %cst_13 = arith.constant 1.000000e-07 : f32
    %21 = vector.broadcast %cst_13 : f32 to vector<8x1xf32>
    %22 = arith.addf %20, %21 : vector<8x1xf32>
    %23 = math.rsqrt %22 : vector<8x1xf32>
    %24 = vector.broadcast %4 : vector<1x128xf32> to vector<8x128xf32>
    %25 = vector.broadcast %23 : vector<8x1xf32> to vector<8x128xf32>
    %26 = arith.mulf %24, %25 : vector<8x128xf32>
    %27 = arith.mulf %15, %26 : vector<8x128xf32>
    %28 = vector.broadcast %5 : vector<1x128xf32> to vector<8x128xf32>
    %29 = arith.addf %27, %28 : vector<8x128xf32>
    %c0_14 = arith.constant 0 : index
    %c0_15 = arith.constant 0 : index
    %30 = vector.load %arg5[%c0_14, %c0_15] : memref<8x128xf32, #tpu.memory_space<vmem>>, vector<8x128xf32>
    tpu.vector_store %arg5[%c0_14, %c0_15], %29 {strides = array<i32>} : memref<8x128xf32, #tpu.memory_space<vmem>>, vector<8x128xf32>,
    return
  }
  func.func @transform_0(%arg0: i32) -> (i32, i32) {
    %c0_i32 = arith.constant 0 : i32
    %c0_i32_0 = arith.constant 0 : i32
    return %arg0, %c0_i32 : i32, i32
  }
  func.func @transform_1(%arg0: i32) -> (i32, i32) {
    %c0_i32 = arith.constant 0 : i32
    %c0_i32_0 = arith.constant 0 : i32
    return %arg0, %c0_i32 : i32, i32
  }
  func.func @transform_2(%arg0: i32) -> (i32, i32) {
    %c0_i32 = arith.constant 0 : i32
    %c0_i32_0 = arith.constant 0 : i32
    %c0_i32_1 = arith.constant 0 : i32
    return %c0_i32, %c0_i32_0 : i32, i32
  }
  func.func @transform_3(%arg0: i32) -> (i32, i32) {
    %c0_i32 = arith.constant 0 : i32
    %c0_i32_0 = arith.constant 0 : i32
    %c0_i32_1 = arith.constant 0 : i32
    return %c0_i32, %c0_i32_0 : i32, i32
  }
  func.func @transform_4(%arg0: i32) -> (i32, i32) {
    %c0_i32 = arith.constant 0 : i32
    %c0_i32_0 = arith.constant 0 : i32
    return %arg0, %c0_i32 : i32, i32
  }
}

module attributes {stable_mosaic.version = 11 : i64} {
  func.func @self_output_kernel(%arg0: i32, %arg1: memref<8x128xf32, #tpu.memory_space<vmem>>, %arg2: memref<8x128xf32, #tpu.memory_space<vmem>>, %arg3: memref<128x128xf32, #tpu.memory_space<vmem>>, %arg4: memref<3x128xf32, #tpu.memory_space<vmem>>, %arg5: memref<8x128xf32, #tpu.memory_space<vmem>>) attributes {dimension_semantics = [#tpu.dimension_semantics<parallel>], iteration_bounds = array<i64: 2>, scalar_prefetch = 0 : i64, scratch_operands = 0 : i64, tpu.core_type = #tpu.core_type<tc>, window_params = [{transform_indices = @transform_0, window_bounds = array<i64: 8, 128>}, {transform_indices = @transform_1, window_bounds = array<i64: 8, 128>}, {pipeline_mode = #tpu.pipeline_mode<synchronous>, transform_indices = @transform_2, window_bounds = array<i64: 128, 128>}, {pipeline_mode = #tpu.pipeline_mode<synchronous>, transform_indices = @transform_3, window_bounds = array<i64: 3, 128>}, {transform_indices = @transform_4, window_bounds = array<i64: 8, 128>}]} {
    %c0 = arith.constant 0 : index
    %c0_0 = arith.constant 0 : index
    %0 = vector.load %arg1[%c0, %c0_0] : memref<8x128xf32, #tpu.memory_space<vmem>>, vector<8x128xf32>
    %c0_1 = arith.constant 0 : index
    %c0_2 = arith.constant 0 : index
    %1 = vector.load %arg3[%c0_1, %c0_2] : memref<128x128xf32, #tpu.memory_space<vmem>>, vector<128x128xf32>
    %cst = arith.constant dense<0.000000e+00> : vector<8x128xf32>
    %2 = tpu.matmul %0, %1, %cst {dimension_numbers = #tpu.dot_dimension_numbers<[1], [1], [0], [0], [0, 0, 1, 0], [], []>} : vector<8x128xf32>, vector<128x128xf32>, vector<8x128xf32> -> vector<8x128xf32>
    %c0_3 = arith.constant 0 : index
    %c0_4 = arith.constant 0 : index
    %3 = vector.load %arg4[%c0_3, %c0_4] : memref<3x128xf32, #tpu.memory_space<vmem>>, vector<1x128xf32>
    %c1 = arith.constant 1 : index
    %c0_5 = arith.constant 0 : index
    %4 = vector.load %arg4[%c1, %c0_5] : memref<3x128xf32, #tpu.memory_space<vmem>>, vector<1x128xf32>
    %c2 = arith.constant 2 : index
    %c0_6 = arith.constant 0 : index
    %5 = vector.load %arg4[%c2, %c0_6] : memref<3x128xf32, #tpu.memory_space<vmem>>, vector<1x128xf32>
    %6 = vector.broadcast %3 : vector<1x128xf32> to vector<8x128xf32>
    %7 = arith.addf %2, %6 : vector<8x128xf32>
    %c0_7 = arith.constant 0 : index
    %c0_8 = arith.constant 0 : index
    %8 = vector.load %arg2[%c0_7, %c0_8] : memref<8x128xf32, #tpu.memory_space<vmem>>, vector<8x128xf32>
    %9 = arith.addf %7, %8 : vector<8x128xf32>
    %cst_9 = arith.constant dense<0.000000e+00> : vector<8xf32>
    %10 = vector.multi_reduction <add>, %9, %cst_9 [1] : vector<8x128xf32> to vector<8xf32>
    %11 = vector.shape_cast %10 : vector<8xf32> to vector<8x1xf32>
    %cst_10 = arith.constant 1.280000e+02 : f32
    %12 = vector.broadcast %cst_10 : f32 to vector<8x1xf32>
    %13 = arith.divf %11, %12 : vector<8x1xf32>
    %14 = vector.broadcast %13 : vector<8x1xf32> to vector<8x128xf32>
    %15 = arith.subf %9, %14 : vector<8x128xf32>
    %16 = arith.mulf %15, %15 : vector<8x128xf32>
    %cst_11 = arith.constant dense<0.000000e+00> : vector<8xf32>
    %17 = vector.multi_reduction <add>, %16, %cst_11 [1] : vector<8x128xf32> to vector<8xf32>
    %18 = vector.shape_cast %17 : vector<8xf32> to vector<8x1xf32>
    %cst_12 = arith.constant 1.280000e+02 : f32
    %19 = vector.broadcast %cst_12 : f32 to vector<8x1xf32>
    %20 = arith.divf %18, %19 : vector<8x1xf32>
    %cst_13 = arith.constant 1.000000e-07 : f32
    %21 = vector.broadcast %cst_13 : f32 to vector<8x1xf32>
    %22 = arith.addf %20, %21 : vector<8x1xf32>
    %23 = math.rsqrt %22 : vector<8x1xf32>
    %24 = vector.broadcast %4 : vector<1x128xf32> to vector<8x128xf32>
    %25 = vector.broadcast %23 : vector<8x1xf32> to vector<8x128xf32>
    %26 = arith.mulf %24, %25 : vector<8x128xf32>
    %27 = arith.mulf %15, %26 : vector<8x128xf32>
    %28 = vector.broadcast %5 : vector<1x128xf32> to vector<8x128xf32>
    %29 = arith.addf %27, %28 : vector<8x128xf32>
    %c0_14 = arith.constant 0 : index
    %c0_15 = arith.constant 0 : index
    %30 = vector.load %arg5[%c0_14, %c0_15] : memref<8x128xf32, #tpu.memory_space<vmem>>, vector<8x128xf32>
    tpu.vector_store %arg5[%c0_14, %c0_15], %29 {strides = array<i32>} : memref<8x128xf32, #tpu.memory_space<vmem>>, vector<8x128xf32>,
    return
  }
  func.func @transform_0(%arg0: i32) -> (i32, i32) {
    %c0_i32 = arith.constant 0 : i32
    %c0_i32_0 = arith.constant 0 : i32
    return %arg0, %c0_i32 : i32, i32
  }
  func.func @transform_1(%arg0: i32) -> (i32, i32) {
    %c0_i32 = arith.constant 0 : i32
    %c0_i32_0 = arith.constant 0 : i32
    return %arg0, %c0_i32 : i32, i32
  }
  func.func @transform_2(%arg0: i32) -> (i32, i32) {
    %c0_i32 = arith.constant 0 : i32
    %c0_i32_0 = arith.constant 0 : i32
    %c0_i32_1 = arith.constant 0 : i32
    return %c0_i32, %c0_i32_0 : i32, i32
  }
  func.func @transform_3(%arg0: i32) -> (i32, i32) {
    %c0_i32 = arith.constant 0 : i32
    %c0_i32_0 = arith.constant 0 : i32
    %c0_i32_1 = arith.constant 0 : i32
    return %c0_i32, %c0_i32_0 : i32, i32
  }
  func.func @transform_4(%arg0: i32) -> (i32, i32) {
    %c0_i32 = arith.constant 0 : i32
    %c0_i32_0 = arith.constant 0 : i32
    return %arg0, %c0_i32 : i32, i32
  }
}

</mosaic_0001>

<llo_original>
// kernel: tpu_custom_call.1
$region0: #{tpu_custom_call.1}
  #allocation0 [shape = 'u32[]', space=smem, size = 0x4, offset = 0x4, fixed_abs, tag = 'smem constant byte address 0x4 - core index']
  #allocation1 [shape = 'u32[144,128]{1,0:T(1,128)}', space=vmem, size = 0x12000, scoped, tag = 'internal scratch']
  %s0 = inlined_call_operand.hbm [shape: f32[14,128], index: 0, kind: input, shape index: {}]
  %s1 = inlined_call_operand.hbm [shape: f32[14,128], index: 1, kind: input, shape index: {}]
  %s2 = inlined_call_operand.hbm [shape: f32[128,128], index: 2, kind: input, shape index: {}]
  %s3 = inlined_call_operand.vmem [shape: f32[3,128], index: 3, kind: input, shape index: {}]
  %s4 = inlined_call_operand.hbm [shape: f32[14,128], index: 4, kind: output, shape index: {}]
  %s5 = sld [smem:[#allocation0]]
  $region61: #{tpu_custom_call.1} parent=0
    _
  %s7 = ssub.s32 1, %s5
  %s8 = scalar_select 0, %s7, %s5
  $region1: #{tpu_custom_call.1} parent=0
    #allocation2 [shape = 'u8[8192]{0}', space=vmem, size = 0x2000, scoped, tag = 'input window, operand 0']
    #allocation3 [shape = 's32[2]{0}', space=sflag, size = 0x8, scoped, tag = 'scoped memory for tpu_custom_call.1']
    #allocation4 [shape = 's32[2]{0}', space=sflag, size = 0x8, scoped, tag = 'scoped memory for tpu_custom_call.1']
    #allocation5 [shape = 'u8[8192]{0}', space=vmem, size = 0x2000, scoped, tag = 'input window, operand 1']
    #allocation6 [shape = 's32[2]{0}', space=sflag, size = 0x8, scoped, tag = 'scoped memory for tpu_custom_call.1']
    #allocation7 [shape = 'u8[65536]{0}', space=vmem, size = 0x10000, scoped, tag = 'input window, operand 2, single buffered']
    #allocation8 [shape = 'u8[8192]{0}', space=vmem, size = 0x2000, scoped, tag = 'output window, operand 0']
    %9 = vsyncpa [#allocation3], 0
    %s10 = scalar_lea.sflag [#allocation3], 1
    %11 = vsyncpa %s10, 0
    %12 = vsyncpa [#allocation6], 0
    %s13 = scalar_lea.sflag [#allocation6], 1
    %14 = vsyncpa %s13, 0
    %15 = vsyncpa [#allocation4], 0
    %s16 = scalar_lea.sflag [#allocation4], 1
    %17 = vsyncpa %s16, 0
    loop: start=0, step=1, limit=4
    $region2: #{tpu_custom_call.1} parent=1 // loop_pre_header
      _
    $region3: #{tpu_custom_call.1} parent=1 // loop_header
      %s19 = sphi 0, %s23
      %p20 = scmp.ge.s32.totalorder %s19, 4
      %s29 = sphi 0, %s31
      %s32 = sphi 0, %s29
      %s33 = sphi 0, %s32
      %s49 = sphi 0, %s33
      %s55 = sphi 0, %s57
      %s58 = sphi 0, %s55
      %s59 = sphi 0, %s58
      %s75 = sphi 0, %s59
      %s79 = sphi 0, %s79
      %s81 = sphi 0, %s79
      %s82 = sphi 0, %s81
      %s96 = sphi 0, %s82
      %s100 = sphi 0, %s100
      %s102 = sphi 0, %s100
      %s103 = sphi 0, %s102
      %s117 = sphi 0, %s103
      %s123 = sphi 0, %s125
      %s126 = sphi 0, %s123
      %s127 = sphi 0, %s126
      %s143 = sphi 0, %s127
    $region4: #{tpu_custom_call.1} parent=1 // loop_header_branch
      %22 = sbr.rel (%p20) target = $region8
    $region5: #{tpu_custom_call.1} parent=1 // loop_body
      %s24 = ssub.s32 %s19, 1
      %s25 = ssub.s32 %s19, 2
      %s26 = sadd.s32 %s19, 1
      %s27 = ssub.s32 %s19, %s26
      %p28 = scmp.eq.s32.totalorder %s27, 0
      %s30 = sadd.s32 %s29, 1
      %s31 = scalar_select %p28, %s29, %s30
      %p34 = pneg %p28
      %p35 = scmp.eq.s32.totalorder %s19, 1
      %p36 = por %p34, %p35
      %p37 = scmp.ne.s32.totalorder %s29, %s32
      %p38 = scmp.eq.s32.totalorder %s19, 0
      %p39 = por %p37, %p38
      %p40 = scmp.ne.s32.totalorder %s29, %s32
      %p41 = scmp.eq.s32.totalorder %s24, 1
      %p42 = por %p40, %p41
      %p43 = scmp.ne.s32.totalorder %s32, %s33
      %p44 = scmp.eq.s32.totalorder %s24, 0
      %p45 = por %p43, %p44
      %p46 = scmp.ne.s32.totalorder %s32, %s33
      %p47 = scmp.eq.s32.totalorder %s25, 1
      %p48 = por %p46, %p47
      %p50 = scmp.ne.s32.totalorder %s33, %s49
      %p51 = scmp.eq.s32.totalorder %s25, 0
      %p52 = por %p50, %p51
      %s53 = ssub.s32 %s19, %s26
      %p54 = scmp.eq.s32.totalorder %s53, 0
      %s56 = sadd.s32 %s55, 1
      %s57 = scalar_select %p54, %s55, %s56
      %p60 = pneg %p54
      %p61 = scmp.eq.s32.totalorder %s19, 1
      %p62 = por %p60, %p61
      %p63 = scmp.ne.s32.totalorder %s55, %s58
      %p64 = scmp.eq.s32.totalorder %s19, 0
      %p65 = por %p63, %p64
      %p66 = scmp.ne.s32.totalorder %s55, %s58
      %p67 = scmp.eq.s32.totalorder %s24, 1
      %p68 = por %p66, %p67
      %p69 = scmp.ne.s32.totalorder %s58, %s59
      %p70 = scmp.eq.s32.totalorder %s24, 0
      %p71 = por %p69, %p70
      %p72 = scmp.ne.s32.totalorder %s58, %s59
      %p73 = scmp.eq.s32.totalorder %s25, 1
      %p74 = por %p72, %p73
      %p76 = scmp.ne.s32.totalorder %s59, %s75
      %p77 = scmp.eq.s32.totalorder %s25, 0
      %p78 = por %p76, %p77
      %s80 = sadd.s32 %s79, 1
      %p83 = scmp.eq.s32.totalorder %s19, 1
      %p84 = scmp.ne.s32.totalorder %s79, %s81
      %p85 = scmp.eq.s32.totalorder %s19, 0
      %p86 = por %p84, %p85
      %p87 = scmp.ne.s32.totalorder %s79, %s81
      %p88 = scmp.eq.s32.totalorder %s24, 1
      %p89 = por %p87, %p88
      %p90 = scmp.ne.s32.totalorder %s81, %s82
      %p91 = scmp.eq.s32.totalorder %s24, 0
      %p92 = por %p90, %p91
      %p93 = scmp.ne.s32.totalorder %s81, %s82
      %p94 = scmp.eq.s32.totalorder %s25, 1
      %p95 = por %p93, %p94
      %p97 = scmp.ne.s32.totalorder %s82, %s96
      %p98 = scmp.eq.s32.totalorder %s25, 0
      %p99 = por %p97, %p98
      %s101 = sadd.s32 %s100, 1
      %p104 = scmp.eq.s32.totalorder %s19, 1
      %p105 = scmp.ne.s32.totalorder %s100, %s102
      %p106 = scmp.eq.s32.totalorder %s19, 0
      %p107 = por %p105, %p106
      %p108 = scmp.ne.s32.totalorder %s100, %s102
      %p109 = scmp.eq.s32.totalorder %s24, 1
      %p110 = por %p108, %p109
      %p111 = scmp.ne.s32.totalorder %s102, %s103
      %p112 = scmp.eq.s32.totalorder %s24, 0
      %p113 = por %p111, %p112
      %p114 = scmp.ne.s32.totalorder %s102, %s103
      %p115 = scmp.eq.s32.totalorder %s25, 1
      %p116 = por %p114, %p115
      %p118 = scmp.ne.s32.totalorder %s103, %s117
      %p119 = scmp.eq.s32.totalorder %s25, 0
      %p120 = por %p118, %p119
      %s121 = ssub.s32 %s19, %s26
      %p122 = scmp.eq.s32.totalorder %s121, 0
      %s124 = sadd.s32 %s123, 1
      %s125 = scalar_select %p122, %s123, %s124
      %p128 = pneg %p122
      %p129 = scmp.eq.s32.totalorder %s19, 1
      %p130 = por %p128, %p129
      %p131 = scmp.ne.s32.totalorder %s123, %s126
      %p132 = scmp.eq.s32.totalorder %s19, 0
      %p133 = por %p131, %p132
      %p134 = scmp.ne.s32.totalorder %s123, %s126
      %p135 = scmp.eq.s32.totalorder %s24, 1
      %p136 = por %p134, %p135
      %p137 = scmp.ne.s32.totalorder %s126, %s127
      %p138 = scmp.eq.s32.totalorder %s24, 0
      %p139 = por %p137, %p138
      %p140 = scmp.ne.s32.totalorder %s126, %s127
      %p141 = scmp.eq.s32.totalorder %s25, 1
      %p142 = por %p140, %p141
      %p144 = scmp.ne.s32.totalorder %s127, %s143
      %p145 = scmp.eq.s32.totalorder %s25, 0
      %p146 = por %p144, %p145
      %p147 = scmp.le.s32.totalorder 1, %s19
      %p148 = scmp.lt.s32.totalorder %s19, 3
      %p149 = pnand %p147, %p148
      %p150 = pneg %p149
      // Predicated region
      $region9: #{tpu_custom_call.1} parent=5 // pred_check
        _
      $region10: #{tpu_custom_call.1} parent=5 // pred_check_branch
        %152 = sbr.rel (%p149) target = $region12
      $region11: #{tpu_custom_call.1} parent=5 // pred_region
        %s153 = ssub.s32 %s19, 1
        // Predicated region
        $region13: #{tpu_custom_call.1} parent=11 // pred_check
          %p154 = pneg %p92
        $region14: #{tpu_custom_call.1} parent=11 // pred_check_branch
          %156 = sbr.rel (%p154) target = $region16
        $region15: #{tpu_custom_call.1} parent=11 // pred_region
          %s158 = ssub.s32 2048, 2048
          %159 = vsyncadd [#allocation6], %s158
          %s160 = sshll.u32 [#allocation7], 4
          %s161 = int_to_ptr.vmem [resolvable:$true] %s160
          %166 = dma.hbm_to_vmem [thread:$0]  %s2, 2048, %s161, [#allocation6], 128, 128, 8
        $region16: #{tpu_custom_call.1} parent=11 // pred_fallthru
          _
        // Predicated region
        $region17: #{tpu_custom_call.1} parent=11 // pred_check
          %p167 = pneg %p113
        $region18: #{tpu_custom_call.1} parent=11 // pred_check_branch
          %169 = sbr.rel (%p167) target = $region20
        $region19: #{tpu_custom_call.1} parent=11 // pred_region
          _
        $region20: #{tpu_custom_call.1} parent=11 // pred_fallthru
          _
      $region12: #{tpu_custom_call.1} parent=5 // pred_fallthru
        _
      %p170 = scmp.lt.s32.totalorder %s19, 2
      // Predicated region
      $region21: #{tpu_custom_call.1} parent=5 // pred_check
        %p171 = pneg %p170
      $region22: #{tpu_custom_call.1} parent=5 // pred_check_branch
        %173 = sbr.rel (%p171) target = $region24
      $region23: #{tpu_custom_call.1} parent=5 // pred_region
        // Predicated region
        $region25: #{tpu_custom_call.1} parent=23 // pred_check
          %p174 = pneg %p39
        $region26: #{tpu_custom_call.1} parent=23 // pred_check_branch
          %176 = sbr.rel (%p174) target = $region28
        $region27: #{tpu_custom_call.1} parent=23 // pred_region
          %s177 = sand.u32 %s29, 1
          %s178 = scalar_lea.sflag [#allocation3], %s177
          %s179 = sand.u32 %s29, 1
          %s180 = smul.addr %s179, 8
          %s181 = scalar_lea.vmem [#allocation2], %s180
          %s183 = ssub.s32 128, 128
          %184 = vsyncadd %s178, %s183
          %s185 = smul.addr %s19, 128
          %s186 = scalar_lea.hbm %s0, %s185
          %s188 = sshll.u32 %s181, 4
          %s189 = int_to_ptr.vmem [resolvable:$true] %s188
          %191 = dma.hbm_to_vmem [thread:$0]  %s186, 128, %s189, %s178
        $region28: #{tpu_custom_call.1} parent=23 // pred_fallthru
          _
        // Predicated region
        $region29: #{tpu_custom_call.1} parent=23 // pred_check
          %p192 = pneg %p65
        $region30: #{tpu_custom_call.1} parent=23 // pred_check_branch
          %194 = sbr.rel (%p192) target = $region32
        $region31: #{tpu_custom_call.1} parent=23 // pred_region
          %s195 = sand.u32 %s19, 1
          %s196 = scalar_lea.sflag [#allocation6], %s195
          %s197 = sand.u32 %s55, 1
          %s198 = smul.addr %s197, 8
          %s199 = scalar_lea.vmem [#allocation5], %s198
          %s201 = ssub.s32 128, 128
          %202 = vsyncadd %s196, %s201
          %s203 = smul.addr %s19, 128
          %s204 = scalar_lea.hbm %s1, %s203
          %s206 = sshll.u32 %s199, 4
          %s207 = int_to_ptr.vmem [resolvable:$true] %s206
          %209 = dma.hbm_to_vmem [thread:$0]  %s204, 128, %s207, %s196
        $region32: #{tpu_custom_call.1} parent=23 // pred_fallthru
          _
      $region24: #{tpu_custom_call.1} parent=5 // pred_fallthru
        _
      %p210 = scmp.le.s32.totalorder 1, %s19
      %p211 = scmp.lt.s32.totalorder %s19, 3
      %p212 = pnand %p210, %p211
      %p213 = pneg %p212
      // Predicated region
      $region33: #{tpu_custom_call.1} parent=5 // pred_check
        _
      $region34: #{tpu_custom_call.1} parent=5 // pred_check_branch
        %215 = sbr.rel (%p212) target = $region36
      $region35: #{tpu_custom_call.1} parent=5 // pred_region
        %s216 = ssub.s32 %s19, 1
        %s217 = sand.u32 %s32, 1
        %s218 = scalar_lea.sflag [#allocation3], %s217
        %s219 = sand.u32 %s32, 1
        %s220 = smul.addr %s219, 8
        %s221 = scalar_lea.vmem [#allocation2], %s220
        // Predicated region
        $region37: #{tpu_custom_call.1} parent=35 // pred_check
          %p222 = pneg %p45
        $region38: #{tpu_custom_call.1} parent=35 // pred_check_branch
          %224 = sbr.rel (%p222) target = $region40
        $region39: #{tpu_custom_call.1} parent=35 // pred_region
          %225 = dma.done %s218, 128
        $region40: #{tpu_custom_call.1} parent=35 // pred_fallthru
          _
        %s226 = sand.u32 %s24, 1
        %s227 = scalar_lea.sflag [#allocation6], %s226
        %s228 = sand.u32 %s58, 1
        %s229 = smul.addr %s228, 8
        %s230 = scalar_lea.vmem [#allocation5], %s229
        // Predicated region
        $region41: #{tpu_custom_call.1} parent=35 // pred_check
          %p231 = pneg %p71
        $region42: #{tpu_custom_call.1} parent=35 // pred_check_branch
          %233 = sbr.rel (%p231) target = $region44
        $region43: #{tpu_custom_call.1} parent=35 // pred_region
          %234 = dma.done %s227, 128
        $region44: #{tpu_custom_call.1} parent=35 // pred_fallthru
          _
        // Predicated region
        $region45: #{tpu_custom_call.1} parent=35 // pred_check
          %p235 = pneg %p92
        $region46: #{tpu_custom_call.1} parent=35 // pred_check_branch
          %237 = sbr.rel (%p235) target = $region48
        $region47: #{tpu_custom_call.1} parent=35 // pred_region
          %238 = dma.done [#allocation6], 2048
        $region48: #{tpu_custom_call.1} parent=35 // pred_fallthru
          _
        %s239 = sand.u32 %s32, 1
        %s240 = scalar_lea.sflag [#allocation3], %s239
        %s241 = sand.u32 %s32, 1
        %s242 = smul.addr %s241, 8
        %s243 = scalar_lea.vmem [#allocation2], %s242
        %p244 = pneg %p45
        %p245 = pneg %p42
        %s246 = sand.u32 %s24, 1
        %s247 = scalar_lea.sflag [#allocation6], %s246
        %s248 = sand.u32 %s58, 1
        %s249 = smul.addr %s248, 8
        %s250 = scalar_lea.vmem [#allocation5], %s249
        %p251 = pneg %p71
        %p252 = pneg %p68
        %p253 = pneg %p92
        %p254 = pneg %p89
        %p255 = pneg %p113
        %p256 = pneg %p110
        %p257 = pneg %p139
        %p258 = pneg %p136
        %s259 = sand.u32 %s126, 1
        %s260 = scalar_lea.sflag [#allocation4], %s259
        %s261 = sand.u32 %s126, 1
        %s262 = smul.addr %s261, 8
        %s263 = scalar_lea.vmem [#allocation8], %s262
        %v264 = vld [vmem:[%s221] sm:$0xff]
        %v265 = vld [vmem:[#allocation7] sm:$0xff]
        %v266 = vld [vmem:[#allocation7 + $0x8] sm:$0xff]
        %v267 = vld [vmem:[#allocation7 + $0x10] sm:$0xff]
        %v268 = vld [vmem:[#allocation7 + $0x18] sm:$0xff]
        %v269 = vld [vmem:[#allocation7 + $0x20] sm:$0xff]
        %v270 = vld [vmem:[#allocation7 + $0x28] sm:$0xff]
        %v271 = vld [vmem:[#allocation7 + $0x30] sm:$0xff]
        %v272 = vld [vmem:[#allocation7 + $0x38] sm:$0xff]
        %v273 = vld [vmem:[#allocation7 + $0x40] sm:$0xff]
        %v274 = vld [vmem:[#allocation7 + $0x48] sm:$0xff]
        %v275 = vld [vmem:[#allocation7 + $0x50] sm:$0xff]
        %v276 = vld [vmem:[#allocation7 + $0x58] sm:$0xff]
        %v277 = vld [vmem:[#allocation7 + $0x60] sm:$0xff]
        %v278 = vld [vmem:[#allocation7 + $0x68] sm:$0xff]
        %v279 = vld [vmem:[#allocation7 + $0x70] sm:$0xff]
        %v280 = vld [vmem:[#allocation7 + $0x78] sm:$0xff]
        %v281 = vld [vmem:[%s3] sm:$0x1]
        %v282 = vld [vmem:[%s3 + $0x1] sm:$0x1]
        %v283 = vld [vmem:[%s3 + $0x2] sm:$0x1]
        %v284 = vlaneseq
        %v285 = vshrl.u32 %v284, 7
        %v286 = vsub.s32 0, %v285
        %v287 = vrot.slane %v281, %v286
        %288 = vmatprep.subr.mxu0 0.0
        %289 = vmatpush1.xpose.msra.mxu0 %v265
        %290 = vmatprep.subr.mxu0 0.0
        %291 = vmatpush1.xpose.msra.mxu0 %v266
        %292 = vmatprep.subr.mxu0 0.0
        %293 = vmatpush1.xpose.msra.mxu0 %v267
        %294 = vmatprep.subr.mxu0 0.0
        %295 = vmatpush1.xpose.msra.mxu0 %v268
        %296 = vmatprep.subr.mxu0 0.0
        %297 = vmatpush1.xpose.msra.mxu0 %v269
        %298 = vmatprep.subr.mxu0 0.0
        %299 = vmatpush1.xpose.msra.mxu0 %v270
        %300 = vmatprep.subr.mxu0 0.0
        %301 = vmatpush1.xpose.msra.mxu0 %v271
        %302 = vmatprep.subr.mxu0 0.0
        %303 = vmatpush1.xpose.msra.mxu0 %v272
        %304 = vmatprep.subr.mxu0 0.0
        %305 = vmatpush1.xpose.msra.mxu0 %v273
        %306 = vmatprep.subr.mxu0 0.0
        %307 = vmatpush1.xpose.msra.mxu0 %v274
        %308 = vmatprep.subr.mxu0 0.0
        %309 = vmatpush1.xpose.msra.mxu0 %v275
        %310 = vmatprep.subr.mxu0 0.0
        %311 = vmatpush1.xpose.msra.mxu0 %v276
        %312 = vmatprep.subr.mxu0 0.0
        %313 = vmatpush1.xpose.msra.mxu0 %v277
        %314 = vmatprep.subr.mxu0 0.0
        %315 = vmatpush1.xpose.msra.mxu0 %v278
        %316 = vmatprep.subr.mxu0 0.0
        %317 = vmatpush1.xpose.msra.mxu0 %v279
        %318 = vmatprep.subr.mxu0 0.0
        %319 = vmatpush1.xpose.msra.mxu0 %v280
        %320 = vmatprep.subr.mxu0 0.0
        %321 = vmatpush1.xpose.msra.mxu0 0.0
        %322 = vmatprep.subr.mxu0 0.0
        %323 = vmatpush1.xpose.msra.mxu0 0.0
        %324 = vmatprep.subr.mxu0 0.0
        %325 = vmatpush1.xpose.msra.mxu0 0.0
        %326 = vmatprep.subr.mxu0 0.0
        %327 = vmatpush1.xpose.msra.mxu0 0.0
        %328 = vmatprep.subr.mxu0 0.0
        %329 = vmatpush1.xpose.msra.mxu0 0.0
        %330 = vmatprep.subr.mxu0 0.0
        %331 = vmatpush1.xpose.msra.mxu0 0.0
        %332 = vmatprep.subr.mxu0 0.0
        %333 = vmatpush1.xpose.msra.mxu0 0.0
        %334 = vmatprep.subr.mxu0 0.0
        %335 = vmatpush1.xpose.msra.mxu0 0.0
        %336 = vmatprep.subr.mxu0 0.0
        %337 = vmatpush1.xpose.msra.mxu0 0.0
        %338 = vmatprep.subr.mxu0 0.0
        %339 = vmatpush1.xpose.msra.mxu0 0.0
        %340 = vmatprep.subr.mxu0 0.0
        %341 = vmatpush1.xpose.msra.mxu0 0.0
        %342 = vmatprep.subr.mxu0 0.0
        %343 = vmatpush1.xpose.msra.mxu0 0.0
        %344 = vmatprep.subr.mxu0 0.0
        %345 = vmatpush1.xpose.msra.mxu0 0.0
        %346 = vmatprep.subr.mxu0 0.0
        %347 = vmatpush1.xpose.msra.mxu0 0.0
        %348 = vmatprep.subr.mxu0 0.0
        %349 = vmatpush1.xpose.msra.mxu0 0.0
        %350 = vmatprep.subr.mxu0 0.0
        %351 = vmatpush1.xpose.msra.mxu0 0.0
        %352 = vmatprep.mubr.f32.mxu0 0.0
        %353 = vmatmul.mubr.f32.gmra.mrb[0].mxu0 %v264
        %v354 = vpop.f32.mrb[0].mxu0
        %v355 = vadd.f32 %v287, %v354
        %v356 = vpop.f32.mrb[0].mxu0
        %357 = vdwg.mxu0
        %v358 = vld [vmem:[%s230] sm:$0xff]
        %v359 = vadd.f32 %v355, %v358
        %360 = vadd.xlane.f32.xlu0 %v359
        %v361 = vpop.xlane.xlu0 %360
        %v362 = vrcp.pop 128.0
        %v363 = vmul.f32 %v361, %v362
        %v364 = vsub.f32 %v359, %v363
        %v365 = vmul.f32 %v364, %v364
        %366 = vadd.xlane.f32.xlu0 %v365
        %v367 = vpop.xlane.xlu0 %366
        %v368 = vmul.f32 %v367, %v362
        %v369 = vadd.f32 %v368, 1e-07
        %v370 = vrsqrt.pop %v369
        %v371 = vlaneseq
        %v372 = vshrl.u32 %v371, 7
        %v373 = vsub.s32 0, %v372
        %v374 = vrot.slane %v282, %v373
        %v375 = vmul.f32 %v374, %v370
        %v376 = vmul.f32 %v364, %v375
        %v377 = vlaneseq
        %v378 = vshrl.u32 %v377, 7
        %v379 = vsub.s32 0, %v378
        %v380 = vrot.slane %v283, %v379
        %v381 = vadd.f32 %v376, %v380
        %382 = vst [vmem:[%s263] sm:$0xff] %v381
        %s383 = sand.u32 %s126, 1
        %s384 = scalar_lea.sflag [#allocation4], %s383
        %s385 = sand.u32 %s126, 1
        %s386 = smul.addr %s385, 8
        %s387 = scalar_lea.vmem [#allocation8], %s386
        // Predicated region
        $region49: #{tpu_custom_call.1} parent=35 // pred_check
          %p388 = pneg %p136
        $region50: #{tpu_custom_call.1} parent=35 // pred_check_branch
          %390 = sbr.rel (%p388) target = $region52
        $region51: #{tpu_custom_call.1} parent=35 // pred_region
          %s392 = ssub.s32 128, 128
          %393 = vsyncadd %s384, %s392
          %s394 = smul.addr %s24, 128
          %s395 = scalar_lea.hbm %s4, %s394
          %s397 = sshll.u32 %s387, 4
          %s398 = int_to_ptr.vmem [resolvable:$true] %s397
          %400 = dma.vmem_to_hbm [thread:$0]  %s398, 128, %s395, %s384
        $region52: #{tpu_custom_call.1} parent=35 // pred_fallthru
          _
      $region36: #{tpu_custom_call.1} parent=5 // pred_fallthru
        _
      %p401 = scmp.le.s32.totalorder 2, %s19
      // Predicated region
      $region53: #{tpu_custom_call.1} parent=5 // pred_check
        %p402 = pneg %p401
      $region54: #{tpu_custom_call.1} parent=5 // pred_check_branch
        %404 = sbr.rel (%p402) target = $region56
      $region55: #{tpu_custom_call.1} parent=5 // pred_region
        %s405 = ssub.s32 %s19, 2
        // Predicated region
        $region57: #{tpu_custom_call.1} parent=55 // pred_check
          %p406 = pneg %p142
        $region58: #{tpu_custom_call.1} parent=55 // pred_check_branch
          %408 = sbr.rel (%p406) target = $region60
        $region59: #{tpu_custom_call.1} parent=55 // pred_region
          %s409 = sand.u32 %s127, 1
          %s410 = scalar_lea.sflag [#allocation4], %s409
          %s411 = sand.u32 %s127, 1
          %s412 = smul.addr %s411, 8
          %s413 = scalar_lea.vmem [#allocation8], %s412
          %414 = dma.done %s410, 128
        $region60: #{tpu_custom_call.1} parent=55 // pred_fallthru
          _
      $region56: #{tpu_custom_call.1} parent=5 // pred_fallthru
        _
    $region6: #{tpu_custom_call.1} parent=1 // loop_footer
      %s23 = sadd.s32 1, %s19
    $region7: #{tpu_custom_call.1} parent=1 // loop_footer_branch
      %18 = sbr.rel target = $region3
    $region8: #{tpu_custom_call.1} parent=1 // loop_exit
      _
    %415 = vsyncpa [#allocation3], 1
    %s416 = scalar_lea.sflag [#allocation3], 1
    %417 = vsyncpa %s416, 1
    %418 = vsyncpa [#allocation6], 1
    %s419 = scalar_lea.sflag [#allocation6], 1
    %420 = vsyncpa %s419, 1
    %421 = vsyncpa [#allocation4], 1
    %s422 = scalar_lea.sflag [#allocation4], 1
    %423 = vsyncpa %s422, 1

// kernel: tpu_custom_call.1
$region0: #{tpu_custom_call.1}
  #allocation0 [shape = 'u32[]', space=smem, size = 0x4, offset = 0x4, fixed_abs, tag = 'smem constant byte address 0x4 - core index']
  #allocation1 [shape = 'u32[144,128]{1,0:T(1,128)}', space=vmem, size = 0x12000, scoped, tag = 'internal scratch']
  %s0 = inlined_call_operand.hbm [shape: f32[14,128], index: 0, kind: input, shape index: {}]
  %s1 = inlined_call_operand.hbm [shape: f32[14,128], index: 1, kind: input, shape index: {}]
  %s2 = inlined_call_operand.hbm [shape: f32[128,128], index: 2, kind: input, shape index: {}]
  %s3 = inlined_call_operand.vmem [shape: f32[3,128], index: 3, kind: input, shape index: {}]
  %s4 = inlined_call_operand.hbm [shape: f32[14,128], index: 4, kind: output, shape index: {}]
  %s5 = sld [smem:[#allocation0]]
  $region61: #{tpu_custom_call.1} parent=0
    _
  %s7 = ssub.s32 1, %s5
  %s8 = scalar_select 0, %s7, %s5
  $region1: #{tpu_custom_call.1} parent=0
    #allocation2 [shape = 'u8[8192]{0}', space=vmem, size = 0x2000, scoped, tag = 'input window, operand 0']
    #allocation3 [shape = 's32[2]{0}', space=sflag, size = 0x8, scoped, tag = 'scoped memory for tpu_custom_call.1']
    #allocation4 [shape = 's32[2]{0}', space=sflag, size = 0x8, scoped, tag = 'scoped memory for tpu_custom_call.1']
    #allocation5 [shape = 'u8[8192]{0}', space=vmem, size = 0x2000, scoped, tag = 'input window, operand 1']
    #allocation6 [shape = 's32[2]{0}', space=sflag, size = 0x8, scoped, tag = 'scoped memory for tpu_custom_call.1']
    #allocation7 [shape = 'u8[65536]{0}', space=vmem, size = 0x10000, scoped, tag = 'input window, operand 2, single buffered']
    #allocation8 [shape = 'u8[8192]{0}', space=vmem, size = 0x2000, scoped, tag = 'output window, operand 0']
    %9 = vsyncpa [#allocation3], 0
    %s10 = scalar_lea.sflag [#allocation3], 1
    %11 = vsyncpa %s10, 0
    %12 = vsyncpa [#allocation6], 0
    %s13 = scalar_lea.sflag [#allocation6], 1
    %14 = vsyncpa %s13, 0
    %15 = vsyncpa [#allocation4], 0
    %s16 = scalar_lea.sflag [#allocation4], 1
    %17 = vsyncpa %s16, 0
    loop: start=0, step=1, limit=4
    $region2: #{tpu_custom_call.1} parent=1 // loop_pre_header
      _
    $region3: #{tpu_custom_call.1} parent=1 // loop_header
      %s19 = sphi 0, %s23
      %p20 = scmp.ge.s32.totalorder %s19, 4
      %s29 = sphi 0, %s31
      %s32 = sphi 0, %s29
      %s33 = sphi 0, %s32
      %s49 = sphi 0, %s33
      %s55 = sphi 0, %s57
      %s58 = sphi 0, %s55
      %s59 = sphi 0, %s58
      %s75 = sphi 0, %s59
      %s79 = sphi 0, %s79
      %s81 = sphi 0, %s79
      %s82 = sphi 0, %s81
      %s96 = sphi 0, %s82
      %s100 = sphi 0, %s100
      %s102 = sphi 0, %s100
      %s103 = sphi 0, %s102
      %s117 = sphi 0, %s103
      %s123 = sphi 0, %s125
      %s126 = sphi 0, %s123
      %s127 = sphi 0, %s126
      %s143 = sphi 0, %s127
    $region4: #{tpu_custom_call.1} parent=1 // loop_header_branch
      %22 = sbr.rel (%p20) target = $region8
    $region5: #{tpu_custom_call.1} parent=1 // loop_body
      %s24 = ssub.s32 %s19, 1
      %s25 = ssub.s32 %s19, 2
      %s26 = sadd.s32 %s19, 1
      %s27 = ssub.s32 %s19, %s26
      %p28 = scmp.eq.s32.totalorder %s27, 0
      %s30 = sadd.s32 %s29, 1
      %s31 = scalar_select %p28, %s29, %s30
      %p34 = pneg %p28
      %p35 = scmp.eq.s32.totalorder %s19, 1
      %p36 = por %p34, %p35
      %p37 = scmp.ne.s32.totalorder %s29, %s32
      %p38 = scmp.eq.s32.totalorder %s19, 0
      %p39 = por %p37, %p38
      %p40 = scmp.ne.s32.totalorder %s29, %s32
      %p41 = scmp.eq.s32.totalorder %s24, 1
      %p42 = por %p40, %p41
      %p43 = scmp.ne.s32.totalorder %s32, %s33
      %p44 = scmp.eq.s32.totalorder %s24, 0
      %p45 = por %p43, %p44
      %p46 = scmp.ne.s32.totalorder %s32, %s33
      %p47 = scmp.eq.s32.totalorder %s25, 1
      %p48 = por %p46, %p47
      %p50 = scmp.ne.s32.totalorder %s33, %s49
      %p51 = scmp.eq.s32.totalorder %s25, 0
      %p52 = por %p50, %p51
      %s53 = ssub.s32 %s19, %s26
      %p54 = scmp.eq.s32.totalorder %s53, 0
      %s56 = sadd.s32 %s55, 1
      %s57 = scalar_select %p54, %s55, %s56
      %p60 = pneg %p54
      %p61 = scmp.eq.s32.totalorder %s19, 1
      %p62 = por %p60, %p61
      %p63 = scmp.ne.s32.totalorder %s55, %s58
      %p64 = scmp.eq.s32.totalorder %s19, 0
      %p65 = por %p63, %p64
      %p66 = scmp.ne.s32.totalorder %s55, %s58
      %p67 = scmp.eq.s32.totalorder %s24, 1
      %p68 = por %p66, %p67
      %p69 = scmp.ne.s32.totalorder %s58, %s59
      %p70 = scmp.eq.s32.totalorder %s24, 0
      %p71 = por %p69, %p70
      %p72 = scmp.ne.s32.totalorder %s58, %s59
      %p73 = scmp.eq.s32.totalorder %s25, 1
      %p74 = por %p72, %p73
      %p76 = scmp.ne.s32.totalorder %s59, %s75
      %p77 = scmp.eq.s32.totalorder %s25, 0
      %p78 = por %p76, %p77
      %s80 = sadd.s32 %s79, 1
      %p83 = scmp.eq.s32.totalorder %s19, 1
      %p84 = scmp.ne.s32.totalorder %s79, %s81
      %p85 = scmp.eq.s32.totalorder %s19, 0
      %p86 = por %p84, %p85
      %p87 = scmp.ne.s32.totalorder %s79, %s81
      %p88 = scmp.eq.s32.totalorder %s24, 1
      %p89 = por %p87, %p88
      %p90 = scmp.ne.s32.totalorder %s81, %s82
      %p91 = scmp.eq.s32.totalorder %s24, 0
      %p92 = por %p90, %p91
      %p93 = scmp.ne.s32.totalorder %s81, %s82
      %p94 = scmp.eq.s32.totalorder %s25, 1
      %p95 = por %p93, %p94
      %p97 = scmp.ne.s32.totalorder %s82, %s96
      %p98 = scmp.eq.s32.totalorder %s25, 0
      %p99 = por %p97, %p98
      %s101 = sadd.s32 %s100, 1
      %p104 = scmp.eq.s32.totalorder %s19, 1
      %p105 = scmp.ne.s32.totalorder %s100, %s102
      %p106 = scmp.eq.s32.totalorder %s19, 0
      %p107 = por %p105, %p106
      %p108 = scmp.ne.s32.totalorder %s100, %s102
      %p109 = scmp.eq.s32.totalorder %s24, 1
      %p110 = por %p108, %p109
      %p111 = scmp.ne.s32.totalorder %s102, %s103
      %p112 = scmp.eq.s32.totalorder %s24, 0
      %p113 = por %p111, %p112
      %p114 = scmp.ne.s32.totalorder %s102, %s103
      %p115 = scmp.eq.s32.totalorder %s25, 1
      %p116 = por %p114, %p115
      %p118 = scmp.ne.s32.totalorder %s103, %s117
      %p119 = scmp.eq.s32.totalorder %s25, 0
      %p120 = por %p118, %p119
      %s121 = ssub.s32 %s19, %s26
      %p122 = scmp.eq.s32.totalorder %s121, 0
      %s124 = sadd.s32 %s123, 1
      %s125 = scalar_select %p122, %s123, %s124
      %p128 = pneg %p122
      %p129 = scmp.eq.s32.totalorder %s19, 1
      %p130 = por %p128, %p129
      %p131 = scmp.ne.s32.totalorder %s123, %s126
      %p132 = scmp.eq.s32.totalorder %s19, 0
      %p133 = por %p131, %p132
      %p134 = scmp.ne.s32.totalorder %s123, %s126
      %p135 = scmp.eq.s32.totalorder %s24, 1
      %p136 = por %p134, %p135
      %p137 = scmp.ne.s32.totalorder %s126, %s127
      %p138 = scmp.eq.s32.totalorder %s24, 0
      %p139 = por %p137, %p138
      %p140 = scmp.ne.s32.totalorder %s126, %s127
      %p141 = scmp.eq.s32.totalorder %s25, 1
      %p142 = por %p140, %p141
      %p144 = scmp.ne.s32.totalorder %s127, %s143
      %p145 = scmp.eq.s32.totalorder %s25, 0
      %p146 = por %p144, %p145
      %p147 = scmp.le.s32.totalorder 1, %s19
      %p148 = scmp.lt.s32.totalorder %s19, 3
      %p149 = pnand %p147, %p148
      %p150 = pneg %p149
      // Predicated region
      $region9: #{tpu_custom_call.1} parent=5 // pred_check
        _
      $region10: #{tpu_custom_call.1} parent=5 // pred_check_branch
        %152 = sbr.rel (%p149) target = $region12
      $region11: #{tpu_custom_call.1} parent=5 // pred_region
        %s153 = ssub.s32 %s19, 1
        // Predicated region
        $region13: #{tpu_custom_call.1} parent=11 // pred_check
          %p154 = pneg %p92
        $region14: #{tpu_custom_call.1} parent=11 // pred_check_branch
          %156 = sbr.rel (%p154) target = $region16
        $region15: #{tpu_custom_call.1} parent=11 // pred_region
          %s158 = ssub.s32 2048, 2048
          %159 = vsyncadd [#allocation6], %s158
          %s160 = sshll.u32 [#allocation7], 4
          %s161 = int_to_ptr.vmem [resolvable:$true] %s160
          %166 = dma.hbm_to_vmem [thread:$0]  %s2, 2048, %s161, [#allocation6], 128, 128, 8
        $region16: #{tpu_custom_call.1} parent=11 // pred_fallthru
          _
        // Predicated region
        $region17: #{tpu_custom_call.1} parent=11 // pred_check
          %p167 = pneg %p113
        $region18: #{tpu_custom_call.1} parent=11 // pred_check_branch
          %169 = sbr.rel (%p167) target = $region20
        $region19: #{tpu_custom_call.1} parent=11 // pred_region
          _
        $region20: #{tpu_custom_call.1} parent=11 // pred_fallthru
          _
      $region12: #{tpu_custom_call.1} parent=5 // pred_fallthru
        _
      %p170 = scmp.lt.s32.totalorder %s19, 2
      // Predicated region
      $region21: #{tpu_custom_call.1} parent=5 // pred_check
        %p171 = pneg %p170
      $region22: #{tpu_custom_call.1} parent=5 // pred_check_branch
        %173 = sbr.rel (%p171) target = $region24
      $region23: #{tpu_custom_call.1} parent=5 // pred_region
        // Predicated region
        $region25: #{tpu_custom_call.1} parent=23 // pred_check
          %p174 = pneg %p39
        $region26: #{tpu_custom_call.1} parent=23 // pred_check_branch
          %176 = sbr.rel (%p174) target = $region28
        $region27: #{tpu_custom_call.1} parent=23 // pred_region
          %s177 = sand.u32 %s29, 1
          %s178 = scalar_lea.sflag [#allocation3], %s177
          %s179 = sand.u32 %s29, 1
          %s180 = smul.addr %s179, 8
          %s181 = scalar_lea.vmem [#allocation2], %s180
          %s183 = ssub.s32 128, 128
          %184 = vsyncadd %s178, %s183
          %s185 = smul.addr %s19, 128
          %s186 = scalar_lea.hbm %s0, %s185
          %s188 = sshll.u32 %s181, 4
          %s189 = int_to_ptr.vmem [resolvable:$true] %s188
          %191 = dma.hbm_to_vmem [thread:$0]  %s186, 128, %s189, %s178
        $region28: #{tpu_custom_call.1} parent=23 // pred_fallthru
          _
        // Predicated region
        $region29: #{tpu_custom_call.1} parent=23 // pred_check
          %p192 = pneg %p65
        $region30: #{tpu_custom_call.1} parent=23 // pred_check_branch
          %194 = sbr.rel (%p192) target = $region32
        $region31: #{tpu_custom_call.1} parent=23 // pred_region
          %s195 = sand.u32 %s19, 1
          %s196 = scalar_lea.sflag [#allocation6], %s195
          %s197 = sand.u32 %s55, 1
          %s198 = smul.addr %s197, 8
          %s199 = scalar_lea.vmem [#allocation5], %s198
          %s201 = ssub.s32 128, 128
          %202 = vsyncadd %s196, %s201
          %s203 = smul.addr %s19, 128
          %s204 = scalar_lea.hbm %s1, %s203
          %s206 = sshll.u32 %s199, 4
          %s207 = int_to_ptr.vmem [resolvable:$true] %s206
          %209 = dma.hbm_to_vmem [thread:$0]  %s204, 128, %s207, %s196
        $region32: #{tpu_custom_call.1} parent=23 // pred_fallthru
          _
      $region24: #{tpu_custom_call.1} parent=5 // pred_fallthru
        _
      %p210 = scmp.le.s32.totalorder 1, %s19
      %p211 = scmp.lt.s32.totalorder %s19, 3
      %p212 = pnand %p210, %p211
      %p213 = pneg %p212
      // Predicated region
      $region33: #{tpu_custom_call.1} parent=5 // pred_check
        _
      $region34: #{tpu_custom_call.1} parent=5 // pred_check_branch
        %215 = sbr.rel (%p212) target = $region36
      $region35: #{tpu_custom_call.1} parent=5 // pred_region
        %s216 = ssub.s32 %s19, 1
        %s217 = sand.u32 %s32, 1
        %s218 = scalar_lea.sflag [#allocation3], %s217
        %s219 = sand.u32 %s32, 1
        %s220 = smul.addr %s219, 8
        %s221 = scalar_lea.vmem [#allocation2], %s220
        // Predicated region
        $region37: #{tpu_custom_call.1} parent=35 // pred_check
          %p222 = pneg %p45
        $region38: #{tpu_custom_call.1} parent=35 // pred_check_branch
          %224 = sbr.rel (%p222) target = $region40
        $region39: #{tpu_custom_call.1} parent=35 // pred_region
          %225 = dma.done %s218, 128
        $region40: #{tpu_custom_call.1} parent=35 // pred_fallthru
          _
        %s226 = sand.u32 %s24, 1
        %s227 = scalar_lea.sflag [#allocation6], %s226
        %s228 = sand.u32 %s58, 1
        %s229 = smul.addr %s228, 8
        %s230 = scalar_lea.vmem [#allocation5], %s229
        // Predicated region
        $region41: #{tpu_custom_call.1} parent=35 // pred_check
          %p231 = pneg %p71
        $region42: #{tpu_custom_call.1} parent=35 // pred_check_branch
          %233 = sbr.rel (%p231) target = $region44
        $region43: #{tpu_custom_call.1} parent=35 // pred_region
          %234 = dma.done %s227, 128
        $region44: #{tpu_custom_call.1} parent=35 // pred_fallthru
          _
        // Predicated region
        $region45: #{tpu_custom_call.1} parent=35 // pred_check
          %p235 = pneg %p92
        $region46: #{tpu_custom_call.1} parent=35 // pred_check_branch
          %237 = sbr.rel (%p235) target = $region48
        $region47: #{tpu_custom_call.1} parent=35 // pred_region
          %238 = dma.done [#allocation6], 2048
        $region48: #{tpu_custom_call.1} parent=35 // pred_fallthru
          _
        %s239 = sand.u32 %s32, 1
        %s240 = scalar_lea.sflag [#allocation3], %s239
        %s241 = sand.u32 %s32, 1
        %s242 = smul.addr %s241, 8
        %s243 = scalar_lea.vmem [#allocation2], %s242
        %p244 = pneg %p45
        %p245 = pneg %p42
        %s246 = sand.u32 %s24, 1
        %s247 = scalar_lea.sflag [#allocation6], %s246
        %s248 = sand.u32 %s58, 1
        %s249 = smul.addr %s248, 8
        %s250 = scalar_lea.vmem [#allocation5], %s249
        %p251 = pneg %p71
        %p252 = pneg %p68
        %p253 = pneg %p92
        %p254 = pneg %p89
        %p255 = pneg %p113
        %p256 = pneg %p110
        %p257 = pneg %p139
        %p258 = pneg %p136
        %s259 = sand.u32 %s126, 1
        %s260 = scalar_lea.sflag [#allocation4], %s259
        %s261 = sand.u32 %s126, 1
        %s262 = smul.addr %s261, 8
        %s263 = scalar_lea.vmem [#allocation8], %s262
        %v264 = vld [vmem:[%s221] sm:$0xff]
        %v265 = vld [vmem:[#allocation7] sm:$0xff]
        %v266 = vld [vmem:[#allocation7 + $0x8] sm:$0xff]
        %v267 = vld [vmem:[#allocation7 + $0x10] sm:$0xff]
        %v268 = vld [vmem:[#allocation7 + $0x18] sm:$0xff]
        %v269 = vld [vmem:[#allocation7 + $0x20] sm:$0xff]
        %v270 = vld [vmem:[#allocation7 + $0x28] sm:$0xff]
        %v271 = vld [vmem:[#allocation7 + $0x30] sm:$0xff]
        %v272 = vld [vmem:[#allocation7 + $0x38] sm:$0xff]
        %v273 = vld [vmem:[#allocation7 + $0x40] sm:$0xff]
        %v274 = vld [vmem:[#allocation7 + $0x48] sm:$0xff]
        %v275 = vld [vmem:[#allocation7 + $0x50] sm:$0xff]
        %v276 = vld [vmem:[#allocation7 + $0x58] sm:$0xff]
        %v277 = vld [vmem:[#allocation7 + $0x60] sm:$0xff]
        %v278 = vld [vmem:[#allocation7 + $0x68] sm:$0xff]
        %v279 = vld [vmem:[#allocation7 + $0x70] sm:$0xff]
        %v280 = vld [vmem:[#allocation7 + $0x78] sm:$0xff]
        %v281 = vld [vmem:[%s3] sm:$0x1]
        %v282 = vld [vmem:[%s3 + $0x1] sm:$0x1]
        %v283 = vld [vmem:[%s3 + $0x2] sm:$0x1]
        %v284 = vlaneseq
        %v285 = vshrl.u32 %v284, 7
        %v286 = vsub.s32 0, %v285
        %v287 = vrot.slane %v281, %v286
        %288 = vmatprep.subr.mxu0 0.0
        %289 = vmatpush1.xpose.msra.mxu0 %v265
        %290 = vmatprep.subr.mxu0 0.0
        %291 = vmatpush1.xpose.msra.mxu0 %v266
        %292 = vmatprep.subr.mxu0 0.0
        %293 = vmatpush1.xpose.msra.mxu0 %v267
        %294 = vmatprep.subr.mxu0 0.0
        %295 = vmatpush1.xpose.msra.mxu0 %v268
        %296 = vmatprep.subr.mxu0 0.0
        %297 = vmatpush1.xpose.msra.mxu0 %v269
        %298 = vmatprep.subr.mxu0 0.0
        %299 = vmatpush1.xpose.msra.mxu0 %v270
        %300 = vmatprep.subr.mxu0 0.0
        %301 = vmatpush1.xpose.msra.mxu0 %v271
        %302 = vmatprep.subr.mxu0 0.0
        %303 = vmatpush1.xpose.msra.mxu0 %v272
        %304 = vmatprep.subr.mxu0 0.0
        %305 = vmatpush1.xpose.msra.mxu0 %v273
        %306 = vmatprep.subr.mxu0 0.0
        %307 = vmatpush1.xpose.msra.mxu0 %v274
        %308 = vmatprep.subr.mxu0 0.0
        %309 = vmatpush1.xpose.msra.mxu0 %v275
        %310 = vmatprep.subr.mxu0 0.0
        %311 = vmatpush1.xpose.msra.mxu0 %v276
        %312 = vmatprep.subr.mxu0 0.0
        %313 = vmatpush1.xpose.msra.mxu0 %v277
        %314 = vmatprep.subr.mxu0 0.0
        %315 = vmatpush1.xpose.msra.mxu0 %v278
        %316 = vmatprep.subr.mxu0 0.0
        %317 = vmatpush1.xpose.msra.mxu0 %v279
        %318 = vmatprep.subr.mxu0 0.0
        %319 = vmatpush1.xpose.msra.mxu0 %v280
        %320 = vmatprep.subr.mxu0 0.0
        %321 = vmatpush1.xpose.msra.mxu0 0.0
        %322 = vmatprep.subr.mxu0 0.0
        %323 = vmatpush1.xpose.msra.mxu0 0.0
        %324 = vmatprep.subr.mxu0 0.0
        %325 = vmatpush1.xpose.msra.mxu0 0.0
        %326 = vmatprep.subr.mxu0 0.0
        %327 = vmatpush1.xpose.msra.mxu0 0.0
        %328 = vmatprep.subr.mxu0 0.0
        %329 = vmatpush1.xpose.msra.mxu0 0.0
        %330 = vmatprep.subr.mxu0 0.0
        %331 = vmatpush1.xpose.msra.mxu0 0.0
        %332 = vmatprep.subr.mxu0 0.0
        %333 = vmatpush1.xpose.msra.mxu0 0.0
        %334 = vmatprep.subr.mxu0 0.0
        %335 = vmatpush1.xpose.msra.mxu0 0.0
        %336 = vmatprep.subr.mxu0 0.0
        %337 = vmatpush1.xpose.msra.mxu0 0.0
        %338 = vmatprep.subr.mxu0 0.0
        %339 = vmatpush1.xpose.msra.mxu0 0.0
        %340 = vmatprep.subr.mxu0 0.0
        %341 = vmatpush1.xpose.msra.mxu0 0.0
        %342 = vmatprep.subr.mxu0 0.0
        %343 = vmatpush1.xpose.msra.mxu0 0.0
        %344 = vmatprep.subr.mxu0 0.0
        %345 = vmatpush1.xpose.msra.mxu0 0.0
        %346 = vmatprep.subr.mxu0 0.0
        %347 = vmatpush1.xpose.msra.mxu0 0.0
        %348 = vmatprep.subr.mxu0 0.0
        %349 = vmatpush1.xpose.msra.mxu0 0.0
        %350 = vmatprep.subr.mxu0 0.0
        %351 = vmatpush1.xpose.msra.mxu0 0.0
        %352 = vmatprep.mubr.f32.mxu0 0.0
        %353 = vmatmul.mubr.f32.gmra.mrb[0].mxu0 %v264
        %v354 = vpop.f32.mrb[0].mxu0
        %v355 = vadd.f32 %v287, %v354
        %v356 = vpop.f32.mrb[0].mxu0
        %357 = vdwg.mxu0
        %v358 = vld [vmem:[%s230] sm:$0xff]
        %v359 = vadd.f32 %v355, %v358
        %360 = vadd.xlane.f32.xlu0 %v359
        %v361 = vpop.xlane.xlu0 %360
        %v362 = vrcp.pop 128.0
        %v363 = vmul.f32 %v361, %v362
        %v364 = vsub.f32 %v359, %v363
        %v365 = vmul.f32 %v364, %v364
        %366 = vadd.xlane.f32.xlu0 %v365
        %v367 = vpop.xlane.xlu0 %366
        %v368 = vmul.f32 %v367, %v362
        %v369 = vadd.f32 %v368, 1e-07
        %v370 = vrsqrt.pop %v369
        %v371 = vlaneseq
        %v372 = vshrl.u32 %v371, 7
        %v373 = vsub.s32 0, %v372
        %v374 = vrot.slane %v282, %v373
        %v375 = vmul.f32 %v374, %v370
        %v376 = vmul.f32 %v364, %v375
        %v377 = vlaneseq
        %v378 = vshrl.u32 %v377, 7
        %v379 = vsub.s32 0, %v378
        %v380 = vrot.slane %v283, %v379
        %v381 = vadd.f32 %v376, %v380
        %382 = vst [vmem:[%s263] sm:$0xff] %v381
        %s383 = sand.u32 %s126, 1
        %s384 = scalar_lea.sflag [#allocation4], %s383
        %s385 = sand.u32 %s126, 1
        %s386 = smul.addr %s385, 8
        %s387 = scalar_lea.vmem [#allocation8], %s386
        // Predicated region
        $region49: #{tpu_custom_call.1} parent=35 // pred_check
          %p388 = pneg %p136
        $region50: #{tpu_custom_call.1} parent=35 // pred_check_branch
          %390 = sbr.rel (%p388) target = $region52
        $region51: #{tpu_custom_call.1} parent=35 // pred_region
          %s392 = ssub.s32 128, 128
          %393 = vsyncadd %s384, %s392
          %s394 = smul.addr %s24, 128
          %s395 = scalar_lea.hbm %s4, %s394
          %s397 = sshll.u32 %s387, 4
          %s398 = int_to_ptr.vmem [resolvable:$true] %s397
          %400 = dma.vmem_to_hbm [thread:$0]  %s398, 128, %s395, %s384
        $region52: #{tpu_custom_call.1} parent=35 // pred_fallthru
          _
      $region36: #{tpu_custom_call.1} parent=5 // pred_fallthru
        _
      %p401 = scmp.le.s32.totalorder 2, %s19
      // Predicated region
      $region53: #{tpu_custom_call.1} parent=5 // pred_check
        %p402 = pneg %p401
      $region54: #{tpu_custom_call.1} parent=5 // pred_check_branch
        %404 = sbr.rel (%p402) target = $region56
      $region55: #{tpu_custom_call.1} parent=5 // pred_region
        %s405 = ssub.s32 %s19, 2
        // Predicated region
        $region57: #{tpu_custom_call.1} parent=55 // pred_check
          %p406 = pneg %p142
        $region58: #{tpu_custom_call.1} parent=55 // pred_check_branch
          %408 = sbr.rel (%p406) target = $region60
        $region59: #{tpu_custom_call.1} parent=55 // pred_region
          %s409 = sand.u32 %s127, 1
          %s410 = scalar_lea.sflag [#allocation4], %s409
          %s411 = sand.u32 %s127, 1
          %s412 = smul.addr %s411, 8
          %s413 = scalar_lea.vmem [#allocation8], %s412
          %414 = dma.done %s410, 128
        $region60: #{tpu_custom_call.1} parent=55 // pred_fallthru
          _
      $region56: #{tpu_custom_call.1} parent=5 // pred_fallthru
        _
    $region6: #{tpu_custom_call.1} parent=1 // loop_footer
      %s23 = sadd.s32 1, %s19
    $region7: #{tpu_custom_call.1} parent=1 // loop_footer_branch
      %18 = sbr.rel target = $region3
    $region8: #{tpu_custom_call.1} parent=1 // loop_exit
      _
    %415 = vsyncpa [#allocation3], 1
    %s416 = scalar_lea.sflag [#allocation3], 1
    %417 = vsyncpa %s416, 1
    %418 = vsyncpa [#allocation6], 1
    %s419 = scalar_lea.sflag [#allocation6], 1
    %420 = vsyncpa %s419, 1
    %421 = vsyncpa [#allocation4], 1
    %s422 = scalar_lea.sflag [#allocation4], 1
    %423 = vsyncpa %s422, 1

</llo_original>
